<compile_context>
chip_gen: v7x
topology: tpu7x:2x2x1
jax: 0.10.0
libtpu: 0.0.40
codegen_flags: <defaults>
</compile_context>

<pallas_src>
import functools

import jax
import jax.numpy as jnp
from jax import lax
from jax.experimental import pallas as pl
from jax.experimental.pallas import tpu as pltpu

POS_C = 3          # pos_channel (return_polar=False)


def _round_up(x, m):
    return ((x + m - 1) // m) * m


def _sa_kernel(c_ref, n_ref, f_ref,
               w0_ref, b0_ref, w1_ref, b1_ref, w2_ref, b2_ref,
               out_ref, x_ref, acc_ref,
               *, off_n, off_f, n_points):
    ni = pl.program_id(2)
    cn = n_ref.shape[1]
    cf = f_ref.shape[1]
    tile_n = c_ref.shape[2]

    @pl.when(ni == 0)
    def _():
        # Pad rows of the stacking scratch must be exactly 0 (their W0 columns are 0,
        # but stale VMEM could hold NaN/Inf and 0*NaN != 0).  The running max starts
        # at 0: post-ReLU activations are >= 0, so 0 is the identity.
        x_ref[...] = jnp.zeros(x_ref.shape, x_ref.dtype)
        acc_ref[...] = jnp.zeros(acc_ref.shape, acc_ref.dtype)

    # Stack the three channel-first tiles into one [k_pad, T] scratch at 8-aligned
    # sublane offsets (simple masked stores, no sublane rotation).
    x_ref[0:POS_C, :] = c_ref[0].astype(x_ref.dtype)
    x_ref[off_n:off_n + cn, :] = n_ref[0].astype(x_ref.dtype)
    x_ref[off_f:off_f + cf, :] = f_ref[0].astype(x_ref.dtype)

    # Fused layer 0: a single MXU dot over the stacked input.  In-kernel f32->bf16
    # casts ride in slack VPU slots; bias carries the folded BN shift (f32).
    x = x_ref[...].astype(jnp.bfloat16)
    h = jnp.dot(w0_ref[...], x, preferred_element_type=jnp.float32) + b0_ref[...]
    h = jnp.maximum(h, 0.0)

    # MLP chain: bf16 MXU operands, f32 accumulation / bias adds / ReLU.
    h = jnp.dot(w1_ref[...], h.astype(jnp.bfloat16),
                preferred_element_type=jnp.float32) + b1_ref[...]
    h = jnp.maximum(h, 0.0)
    h = jnp.dot(w2_ref[...], h.astype(jnp.bfloat16),
                preferred_element_type=jnp.float32) + b2_ref[...]
    h = jnp.maximum(h, 0.0)

    if n_points % tile_n != 0:
        # Ragged last tile (cdiv grid): zero out-of-range lanes.  Since valid
        # activations are post-ReLU (>= 0), a 0 can never win the running max.
        tile_idx = pl.program_id(0) * pl.num_programs(2) + ni
        lane = lax.broadcasted_iota(jnp.int32, h.shape, 1)
        h = jnp.where(tile_idx * tile_n + lane < n_points, h, 0.0)

    # Per-tile running max is VPU-only: fold 128-lane chunks into a (c_last, 128)
    # accumulator.  The single XLU lane-reduce is deferred to the epilogue so it
    # never competes with vmatmul pushes in the vector-extended slot.
    if tile_n % 128 == 0:
        m = acc_ref[...]
        for k in range(tile_n // 128):
            m = jnp.maximum(m, h[:, k * 128:(k + 1) * 128])
        acc_ref[...] = m
    else:
        # Tiny single full-extent tile: broadcast of the (c_last, 1) max is fine.
        acc_ref[...] = jnp.maximum(acc_ref[...], jnp.max(h, axis=1, keepdims=True))

    @pl.when(ni == pl.num_programs(2) - 1)
    def _():
        out_ref[0, 0] = jnp.max(acc_ref[...], axis=1, keepdims=True)


_TILE_CANDIDATES = (8192, 4096, 2048, 1024, 512, 256, 128)
_TILE_CAP = 8192   # keeps f32 intermediates well inside v7x's 64 MiB VMEM


def _pick_tile(n, cap=_TILE_CAP):
    for t in _TILE_CANDIDATES:
        if t <= cap and n % t == 0:
            return t
    if n <= cap:
        return n          # one full-extent tile per batch (block == full dim)
    return cap            # cdiv grid + masked last tile (VMEM stays bounded)


def surface_abstraction_cd(center, normal, feature, params, tile_n=None,
                           point_splits=None):
    """center: [B,3,N], normal: [B,Cn,N], feature: [B,Cf,N]  (PyTorch channel-first)."""
    B, _, N = center.shape
    cn = normal.shape[1]
    cf = feature.shape[1]

    if tile_n is None:
        tile_n = _pick_tile(N)
    total_tiles = pl.cdiv(N, tile_n)

    if point_splits is None:
        # v7x has 2 TensorCores and shards only "parallel" grid axes: add a second
        # parallel split over the point range when B alone can't fill both cores.
        point_splits = 2 if (B % 2 == 1 and total_tiles % 2 == 0) else 1
    assert total_tiles % point_splits == 0
    tiles_per_split = total_tiles // point_splits

    wl, bl = params["wl"], params["bl"]
    wf, bf = params["wf"], params["bf"]
    w1, b1 = params["w1"], params["b1"]
    w2, b2 = params["w2"], params["b2"]
    mlp0 = wl.shape[0]
    c_last = w2.shape[0]

    # Layer-0 fusion: one [mlp0, k_pad] weight whose column blocks line up with the
    # 8-aligned sublane offsets the kernel stacks center/normal/feature at.  The
    # pad columns are zero, so (zeroed) pad rows of the scratch contribute nothing.
    off_n = _round_up(POS_C, 8)
    off_f = off_n + _round_up(cn, 8)
    k_pad = off_f + _round_up(cf, 8)
    w0 = jnp.zeros((mlp0, k_pad), jnp.float32)
    w0 = w0.at[:, 0:POS_C].set(wl)
    w0 = w0.at[:, off_n:off_n + cn].set(wf[:, :cn])
    w0 = w0.at[:, off_f:off_f + cf].set(wf[:, cn:])
    w0 = w0.astype(jnp.bfloat16)
    b0 = (bl + bf).astype(jnp.float32)
    w1b = w1.astype(jnp.bfloat16)
    w2b = w2.astype(jnp.bfloat16)

    grid = (point_splits, B, tiles_per_split)

    def pt_spec(c):
        return pl.BlockSpec((1, c, tile_n),
                            lambda s, b, n: (b, 0, s * tiles_per_split + n))

    def w_spec(a):
        nd = a.ndim
        return pl.BlockSpec(a.shape, lambda s, b, n: (0,) * nd)

    kernel = functools.partial(_sa_kernel, off_n=off_n, off_f=off_f, n_points=N)

    out = pl.pallas_call(
        kernel,
        out_shape=jax.ShapeDtypeStruct((point_splits, B, c_last, 1), jnp.float32),
        grid_spec=pltpu.PrefetchScalarGridSpec(
            num_scalar_prefetch=0,
            grid=grid,
            in_specs=[
                pt_spec(POS_C), pt_spec(cn), pt_spec(cf),
                w_spec(w0), w_spec(b0),
                w_spec(w1b), w_spec(b1),
                w_spec(w2b), w_spec(b2),
            ],
            out_specs=pl.BlockSpec((1, 1, c_last, 1), lambda s, b, n: (s, b, 0, 0)),
            scratch_shapes=[
                pltpu.VMEM((k_pad, tile_n), jnp.float32),     # stacked layer-0 input
                pltpu.VMEM((c_last, 128), jnp.float32),       # per-lane running max
            ],
        ),
        compiler_params=pltpu.CompilerParams(
            dimension_semantics=("parallel", "parallel", "arbitrary"),
            vmem_limit_bytes=32 * 1024 * 1024),
    )(center, normal, feature, w0, b0, w1b, b1, w2b, b2)

    new_feature = jnp.max(out, axis=0)               # combine point-split partials
    new_center = jnp.zeros((B, 3, 1), jnp.float32)   # zeros(B,1,3).permute(0,2,1)
    new_normal = jnp.zeros((B, 3, 1), jnp.float32)
    return new_center, new_normal, new_feature


# ---------------- parameter construction (deterministic, BN folded) --------------

def _fold_bn(w, b, gamma, beta, mean, var, eps=1e-5):
    scale = gamma / jnp.sqrt(var + eps)
    w_eff = scale[:, None] * w
    b_eff = scale * (b - mean) + beta
    return w_eff, b_eff[:, None]        # bias as [Cout, 1] for lane broadcast


def init_params(key, feat_channel, mlp):
    ks = jax.random.split(key, 16)

    def conv(k, cout, cin):
        kw, kb = jax.random.split(k)
        w = jax.random.normal(kw, (cout, cin), jnp.float32) * 0.1
        b = jax.random.normal(kb, (cout,), jnp.float32) * 0.05
        return w, b

    def bn(k, c):
        k1, k2, k3, k4 = jax.random.split(k, 4)
        gamma = 1.0 + 0.1 * jax.random.normal(k1, (c,), jnp.float32)
        beta = 0.05 * jax.random.normal(k2, (c,), jnp.float32)
        mean = 0.05 * jax.random.normal(k3, (c,), jnp.float32)
        var = 1.0 + 0.1 * jax.random.uniform(k4, (c,), jnp.float32)
        return gamma, beta, mean, var

    wl, bl = _fold_bn(*conv(ks[0], mlp[0], POS_C), *bn(ks[1], mlp[0]))
    wf, bf = _fold_bn(*conv(ks[2], mlp[0], feat_channel), *bn(ks[3], mlp[0]))
    w1, b1 = _fold_bn(*conv(ks[4], mlp[1], mlp[0]), *bn(ks[5], mlp[1]))
    w2, b2 = _fold_bn(*conv(ks[6], mlp[2], mlp[1]), *bn(ks[7], mlp[2]))
    return dict(wl=wl, bl=bl, wf=wf, bf=bf, w1=w1, b1=b1, w2=w2, b2=b2)


def reference_forward(center, normal, feature, params):
    x = jnp.concatenate([center, normal, feature], axis=1).astype(jnp.float32)
    pos, ft = x[:, :POS_C], x[:, POS_C:]
    loc = jnp.einsum("oi,bin->bon", params["wl"], pos) + params["bl"][None]
    f = jnp.einsum("oi,bin->bon", params["wf"], ft) + params["bf"][None]
    h = jnp.maximum(loc + f, 0.0)
    h = jnp.maximum(jnp.einsum("oi,bin->bon", params["w1"], h) + params["b1"][None], 0.0)
    h = jnp.maximum(jnp.einsum("oi,bin->bon", params["w2"], h) + params["b2"][None], 0.0)
    return jnp.max(h, axis=2, keepdims=True)          # [B, C_last, 1]


if __name__ == "__main__":
    C_NORMAL, C_FEAT = 10, 6                 # feat_channel = 16
    MLP = [32, 32, 64]

    key = jax.random.PRNGKey(0)
    kp, kd = jax.random.split(key)
    params = init_params(kp, C_NORMAL + C_FEAT, MLP)

    fwd = jax.jit(functools.partial(surface_abstraction_cd, params=params),
                  static_argnames=("tile_n", "point_splits"))

    # A: single tile per batch.  B: multi-tile running max.  C: B=1 -> auto point
    # split (v7x 2-TC path).  D: N not a multiple of 128 -> cdiv grid + masked tile.
    configs = [
        (2, 256, None),
        (2, 2048, 512),
        (1, 1024, 256),
        (1, 8200, None),
    ]
    for B, N, tile_n in configs:
        kc, kn, kf = jax.random.split(jax.random.fold_in(kd, 10 * N + B), 3)
        center = jax.random.normal(kc, (B, 3, N), jnp.float32)
        normal = jax.random.normal(kn, (B, C_NORMAL, N), jnp.float32)
        feature = jax.random.normal(kf, (B, C_FEAT, N), jnp.float32)

        new_center, new_normal, new_feature = fwd(center, normal, feature, tile_n=tile_n)
        jax.block_until_ready(new_feature)

        ref = reference_forward(center, normal, feature, params)
        assert new_feature.shape == (B, MLP[-1], 1)
        assert new_center.shape == (B, 3, 1) and new_normal.shape == (B, 3, 1)
        err = float(jnp.max(jnp.abs(new_feature - ref)))
        # bf16 MXU operands at every layer -> slightly looser tolerance vs f32 ref.
        assert jnp.allclose(new_feature, ref, atol=4e-2, rtol=4e-2), (B, N, err)

    # TODO(synk): the group_all=False path (farthest_point_sample / query_ball_point /
    # index_points) is data-dependent gathering whose helpers are not provided; only
    # the fully-specified group_all=True branch is implemented here.
    print("KERNEL_OK")
</pallas_src>

<mosaic_0001>
module attributes {stable_mosaic.version = 11 : i64} {
  func.func @_sa_kernel(%arg0: i32, %arg1: i32, %arg2: i32, %arg3: memref<1x3x256xf32, #tpu.memory_space<vmem>>, %arg4: memref<1x10x256xf32, #tpu.memory_space<vmem>>, %arg5: memref<1x6x256xf32, #tpu.memory_space<vmem>>, %arg6: memref<32x32xbf16, #tpu.memory_space<vmem>>, %arg7: memref<32x1xf32, #tpu.memory_space<vmem>>, %arg8: memref<32x32xbf16, #tpu.memory_space<vmem>>, %arg9: memref<32x1xf32, #tpu.memory_space<vmem>>, %arg10: memref<64x32xbf16, #tpu.memory_space<vmem>>, %arg11: memref<64x1xf32, #tpu.memory_space<vmem>>, %arg12: memref<1x1x64x1xf32, #tpu.memory_space<vmem>>, %arg13: memref<32x256xf32, #tpu.memory_space<vmem>>, %arg14: memref<64x128xf32, #tpu.memory_space<vmem>>) attributes {dimension_semantics = [#tpu.dimension_semantics<parallel>, #tpu.dimension_semantics<parallel>, #tpu.dimension_semantics<arbitrary>], iteration_bounds = array<i64: 1, 2, 1>, scalar_prefetch = 0 : i64, scratch_operands = 2 : i64, tpu.core_type = #tpu.core_type<tc>, window_params = [{transform_indices = @transform_0, window_bounds = array<i64: 1, 3, 256>}, {transform_indices = @transform_1, window_bounds = array<i64: 1, 10, 256>}, {transform_indices = @transform_2, window_bounds = array<i64: 1, 6, 256>}, {pipeline_mode = #tpu.pipeline_mode<synchronous>, transform_indices = @transform_3, window_bounds = array<i64: 32, 32>}, {pipeline_mode = #tpu.pipeline_mode<synchronous>, transform_indices = @transform_4, window_bounds = array<i64: 32, 1>}, {pipeline_mode = #tpu.pipeline_mode<synchronous>, transform_indices = @transform_5, window_bounds = array<i64: 32, 32>}, {pipeline_mode = #tpu.pipeline_mode<synchronous>, transform_indices = @transform_6, window_bounds = array<i64: 32, 1>}, {pipeline_mode = #tpu.pipeline_mode<synchronous>, transform_indices = @transform_7, window_bounds = array<i64: 64, 32>}, {pipeline_mode = #tpu.pipeline_mode<synchronous>, transform_indices = @transform_8, window_bounds = array<i64: 64, 1>}, {transform_indices = @transform_9, window_bounds = array<i64: 1, 1, 64, 1>}]} {
    %c0_i32 = arith.constant 0 : i32
    %0 = arith.cmpi eq, %arg2, %c0_i32 : i32
    %1 = arith.extui %0 : i1 to i32
    %c0_i32_0 = arith.constant 0 : i32
    %2 = arith.cmpi ne, %1, %c0_i32_0 : i32
    scf.if %2 {
      %cst_38 = arith.constant 0.000000e+00 : f32
      %46 = vector.broadcast %cst_38 : f32 to vector<32x256xf32>
      %c0_39 = arith.constant 0 : index
      %c0_40 = arith.constant 0 : index
      %47 = vector.load %arg13[%c0_39, %c0_40] : memref<32x256xf32, #tpu.memory_space<vmem>>, vector<32x256xf32>
      tpu.vector_store %arg13[%c0_39, %c0_40], %46 {strides = array<i32>} : memref<32x256xf32, #tpu.memory_space<vmem>>, vector<32x256xf32>,
      %cst_41 = arith.constant 0.000000e+00 : f32
      %48 = vector.broadcast %cst_41 : f32 to vector<64x128xf32>
      %c0_42 = arith.constant 0 : index
      %c0_43 = arith.constant 0 : index
      %49 = vector.load %arg14[%c0_42, %c0_43] : memref<64x128xf32, #tpu.memory_space<vmem>>, vector<64x128xf32>
      tpu.vector_store %arg14[%c0_42, %c0_43], %48 {strides = array<i32>} : memref<64x128xf32, #tpu.memory_space<vmem>>, vector<64x128xf32>,
    } else {
    }
    %c0 = arith.constant 0 : index
    %c0_1 = arith.constant 0 : index
    %c0_2 = arith.constant 0 : index
    %3 = vector.load %arg3[%c0, %c0_1, %c0_2] : memref<1x3x256xf32, #tpu.memory_space<vmem>>, vector<1x3x256xf32>
    %4 = vector.shape_cast %3 : vector<1x3x256xf32> to vector<3x256xf32>
    %c0_3 = arith.constant 0 : index
    %c0_4 = arith.constant 0 : index
    %5 = vector.load %arg13[%c0_3, %c0_4] : memref<32x256xf32, #tpu.memory_space<vmem>>, vector<3x256xf32>
    tpu.vector_store %arg13[%c0_3, %c0_4], %4 {strides = array<i32>} : memref<32x256xf32, #tpu.memory_space<vmem>>, vector<3x256xf32>,
    %c0_5 = arith.constant 0 : index
    %c0_6 = arith.constant 0 : index
    %c0_7 = arith.constant 0 : index
    %6 = vector.load %arg4[%c0_5, %c0_6, %c0_7] : memref<1x10x256xf32, #tpu.memory_space<vmem>>, vector<1x10x256xf32>
    %7 = vector.shape_cast %6 : vector<1x10x256xf32> to vector<10x256xf32>
    %c8 = arith.constant 8 : index
    %c0_8 = arith.constant 0 : index
    %8 = vector.load %arg13[%c8, %c0_8] : memref<32x256xf32, #tpu.memory_space<vmem>>, vector<10x256xf32>
    tpu.vector_store %arg13[%c8, %c0_8], %7 {strides = array<i32>} : memref<32x256xf32, #tpu.memory_space<vmem>>, vector<10x256xf32>,
    %c0_9 = arith.constant 0 : index
    %c0_10 = arith.constant 0 : index
    %c0_11 = arith.constant 0 : index
    %9 = vector.load %arg5[%c0_9, %c0_10, %c0_11] : memref<1x6x256xf32, #tpu.memory_space<vmem>>, vector<1x6x256xf32>
    %10 = vector.shape_cast %9 : vector<1x6x256xf32> to vector<6x256xf32>
    %c24 = arith.constant 24 : index
    %c0_12 = arith.constant 0 : index
    %11 = vector.load %arg13[%c24, %c0_12] : memref<32x256xf32, #tpu.memory_space<vmem>>, vector<6x256xf32>
    tpu.vector_store %arg13[%c24, %c0_12], %10 {strides = array<i32>} : memref<32x256xf32, #tpu.memory_space<vmem>>, vector<6x256xf32>,
    %c0_13 = arith.constant 0 : index
    %c0_14 = arith.constant 0 : index
    %12 = vector.load %arg13[%c0_13, %c0_14] : memref<32x256xf32, #tpu.memory_space<vmem>>, vector<32x256xf32>
    %13 = arith.truncf %12 : vector<32x256xf32> to vector<32x256xbf16>
    %c0_15 = arith.constant 0 : index
    %c0_16 = arith.constant 0 : index
    %14 = vector.load %arg6[%c0_15, %c0_16] : memref<32x32xbf16, #tpu.memory_space<vmem>>, vector<32x32xbf16>
    %cst = arith.constant dense<0.000000e+00> : vector<32x256xf32>
    %15 = tpu.matmul %14, %13, %cst {dimension_numbers = #tpu.dot_dimension_numbers<[1], [0], [0], [1], [0, 0, 1, 1], [], []>} : vector<32x32xbf16>, vector<32x256xbf16>, vector<32x256xf32> -> vector<32x256xf32>
    %c0_17 = arith.constant 0 : index
    %c0_18 = arith.constant 0 : index
    %16 = vector.load %arg7[%c0_17, %c0_18] : memref<32x1xf32, #tpu.memory_space<vmem>>, vector<32x1xf32>
    %17 = vector.broadcast %16 : vector<32x1xf32> to vector<32x256xf32>
    %18 = arith.addf %15, %17 : vector<32x256xf32>
    %cst_19 = arith.constant 0.000000e+00 : f32
    %19 = vector.broadcast %cst_19 : f32 to vector<32x256xf32>
    %20 = arith.maximumf %18, %19 : vector<32x256xf32>
    %c0_20 = arith.constant 0 : index
    %c0_21 = arith.constant 0 : index
    %21 = vector.load %arg8[%c0_20, %c0_21] : memref<32x32xbf16, #tpu.memory_space<vmem>>, vector<32x32xbf16>
    %22 = arith.truncf %20 : vector<32x256xf32> to vector<32x256xbf16>
    %cst_22 = arith.constant dense<0.000000e+00> : vector<32x256xf32>
    %23 = tpu.matmul %21, %22, %cst_22 {dimension_numbers = #tpu.dot_dimension_numbers<[1], [0], [0], [1], [0, 0, 1, 1], [], []>} : vector<32x32xbf16>, vector<32x256xbf16>, vector<32x256xf32> -> vector<32x256xf32>
    %c0_23 = arith.constant 0 : index
    %c0_24 = arith.constant 0 : index
    %24 = vector.load %arg9[%c0_23, %c0_24] : memref<32x1xf32, #tpu.memory_space<vmem>>, vector<32x1xf32>
    %25 = vector.broadcast %24 : vector<32x1xf32> to vector<32x256xf32>
    %26 = arith.addf %23, %25 : vector<32x256xf32>
    %cst_25 = arith.constant 0.000000e+00 : f32
    %27 = vector.broadcast %cst_25 : f32 to vector<32x256xf32>
    %28 = arith.maximumf %26, %27 : vector<32x256xf32>
    %c0_26 = arith.constant 0 : index
    %c0_27 = arith.constant 0 : index
    %29 = vector.load %arg10[%c0_26, %c0_27] : memref<64x32xbf16, #tpu.memory_space<vmem>>, vector<64x32xbf16>
    %30 = arith.truncf %28 : vector<32x256xf32> to vector<32x256xbf16>
    %cst_28 = arith.constant dense<0.000000e+00> : vector<64x256xf32>
    %31 = tpu.matmul %29, %30, %cst_28 {dimension_numbers = #tpu.dot_dimension_numbers<[1], [0], [0], [1], [0, 0, 1, 1], [], []>} : vector<64x32xbf16>, vector<32x256xbf16>, vector<64x256xf32> -> vector<64x256xf32>
    %c0_29 = arith.constant 0 : index
    %c0_30 = arith.constant 0 : index
    %32 = vector.load %arg11[%c0_29, %c0_30] : memref<64x1xf32, #tpu.memory_space<vmem>>, vector<64x1xf32>
    %33 = vector.broadcast %32 : vector<64x1xf32> to vector<64x256xf32>
    %34 = arith.addf %31, %33 : vector<64x256xf32>
    %cst_31 = arith.constant 0.000000e+00 : f32
    %35 = vector.broadcast %cst_31 : f32 to vector<64x256xf32>
    %36 = arith.maximumf %34, %35 : vector<64x256xf32>
    %c0_32 = arith.constant 0 : index
    %c0_33 = arith.constant 0 : index
    %37 = vector.load %arg14[%c0_32, %c0_33] : memref<64x128xf32, #tpu.memory_space<vmem>>, vector<64x128xf32>
    %38 = vector.extract_strided_slice %36 {offsets = [0, 0], sizes = [64, 128], strides = [1, 1]} : vector<64x256xf32> to vector<64x128xf32>
    %39 = arith.maximumf %37, %38 : vector<64x128xf32>
    %40 = vector.extract_strided_slice %36 {offsets = [0, 128], sizes = [64, 128], strides = [1, 1]} : vector<64x256xf32> to vector<64x128xf32>
    %41 = arith.maximumf %39, %40 : vector<64x128xf32>
    %c0_34 = arith.constant 0 : index
    %c0_35 = arith.constant 0 : index
    %42 = vector.load %arg14[%c0_34, %c0_35] : memref<64x128xf32, #tpu.memory_space<vmem>>, vector<64x128xf32>
    tpu.vector_store %arg14[%c0_34, %c0_35], %41 {strides = array<i32>} : memref<64x128xf32, #tpu.memory_space<vmem>>, vector<64x128xf32>,
    %c0_i32_36 = arith.constant 0 : i32
    %43 = arith.cmpi eq, %arg2, %c0_i32_36 : i32
    %44 = arith.extui %43 : i1 to i32
    %c0_i32_37 = arith.constant 0 : i32
    %45 = arith.cmpi ne, %44, %c0_i32_37 : i32
    scf.if %45 {
      %c0_38 = arith.constant 0 : index
      %c0_39 = arith.constant 0 : index
      %46 = vector.load %arg14[%c0_38, %c0_39] : memref<64x128xf32, #tpu.memory_space<vmem>>, vector<64x128xf32>
      %cst_40 = arith.constant dense<0xFF800000> : vector<64xf32>
      %47 = vector.multi_reduction <maximumf>, %46, %cst_40 [1] : vector<64x128xf32> to vector<64xf32>
      %48 = vector.shape_cast %47 : vector<64xf32> to vector<64x1xf32>
      %c0_41 = arith.constant 0 : index
      %c0_42 = arith.constant 0 : index
      %c0_43 = arith.constant 0 : index
      %c0_44 = arith.constant 0 : index
      %49 = vector.load %arg12[%c0_41, %c0_42, %c0_43, %c0_44] : memref<1x1x64x1xf32, #tpu.memory_space<vmem>>, vector<1x1x64x1xf32>
      %50 = vector.shape_cast %49 : vector<1x1x64x1xf32> to vector<64x1xf32>
      %51 = vector.shape_cast %48 : vector<64x1xf32> to vector<1x1x64x1xf32>
      tpu.vector_store %arg12[%c0_41, %c0_42, %c0_43, %c0_44], %51 {strides = array<i32>} : memref<1x1x64x1xf32, #tpu.memory_space<vmem>>, vector<1x1x64x1xf32>,
    } else {
    }
    return
  }
  func.func @transform_0(%arg0: i32, %arg1: i32, %arg2: i32) -> (i32, i32, i32) {
    %c1_i32 = arith.constant 1 : i32
    %0 = arith.muli %arg0, %c1_i32 : i32
    %1 = arith.addi %0, %arg2 : i32
    %c0_i32 = arith.constant 0 : i32
    %c0_i32_0 = arith.constant 0 : i32
    return %arg1, %c0_i32, %1 : i32, i32, i32
  }
  func.func @transform_1(%arg0: i32, %arg1: i32, %arg2: i32) -> (i32, i32, i32) {
    %c1_i32 = arith.constant 1 : i32
    %0 = arith.muli %arg0, %c1_i32 : i32
    %1 = arith.addi %0, %arg2 : i32
    %c0_i32 = arith.constant 0 : i32
    %c0_i32_0 = arith.constant 0 : i32
    return %arg1, %c0_i32, %1 : i32, i32, i32
  }
  func.func @transform_2(%arg0: i32, %arg1: i32, %arg2: i32) -> (i32, i32, i32) {
    %c1_i32 = arith.constant 1 : i32
    %0 = arith.muli %arg0, %c1_i32 : i32
    %1 = arith.addi %0, %arg2 : i32
    %c0_i32 = arith.constant 0 : i32
    %c0_i32_0 = arith.constant 0 : i32
    return %arg1, %c0_i32, %1 : i32, i32, i32
  }
  func.func @transform_3(%arg0: i32, %arg1: i32, %arg2: i32) -> (i32, i32) {
    %c0_i32 = arith.constant 0 : i32
    %c0_i32_0 = arith.constant 0 : i32
    %c0_i32_1 = arith.constant 0 : i32
    return %c0_i32, %c0_i32_0 : i32, i32
  }
  func.func @transform_4(%arg0: i32, %arg1: i32, %arg2: i32) -> (i32, i32) {
    %c0_i32 = arith.constant 0 : i32
    %c0_i32_0 = arith.constant 0 : i32
    %c0_i32_1 = arith.constant 0 : i32
    return %c0_i32, %c0_i32_0 : i32, i32
  }
  func.func @transform_5(%arg0: i32, %arg1: i32, %arg2: i32) -> (i32, i32) {
    %c0_i32 = arith.constant 0 : i32
    %c0_i32_0 = arith.constant 0 : i32
    %c0_i32_1 = arith.constant 0 : i32
    return %c0_i32, %c0_i32_0 : i32, i32
  }
  func.func @transform_6(%arg0: i32, %arg1: i32, %arg2: i32) -> (i32, i32) {
    %c0_i32 = arith.constant 0 : i32
    %c0_i32_0 = arith.constant 0 : i32
    %c0_i32_1 = arith.constant 0 : i32
    return %c0_i32, %c0_i32_0 : i32, i32
  }
  func.func @transform_7(%arg0: i32, %arg1: i32, %arg2: i32) -> (i32, i32) {
    %c0_i32 = arith.constant 0 : i32
    %c0_i32_0 = arith.constant 0 : i32
    %c0_i32_1 = arith.constant 0 : i32
    return %c0_i32, %c0_i32_0 : i32, i32
  }
  func.func @transform_8(%arg0: i32, %arg1: i32, %arg2: i32) -> (i32, i32) {
    %c0_i32 = arith.constant 0 : i32
    %c0_i32_0 = arith.constant 0 : i32
    %c0_i32_1 = arith.constant 0 : i32
    return %c0_i32, %c0_i32_0 : i32, i32
  }
  func.func @transform_9(%arg0: i32, %arg1: i32, %arg2: i32) -> (i32, i32, i32, i32) {
    %c0_i32 = arith.constant 0 : i32
    %c0_i32_0 = arith.constant 0 : i32
    %c0_i32_1 = arith.constant 0 : i32
    return %arg0, %arg1, %c0_i32, %c0_i32_0 : i32, i32, i32, i32
  }
}

</mosaic_0001>

<llo_original>
// kernel: surface_abstraction_cd.1
$region0: #{surface_abstraction_cd.1}
  #allocation0 [shape = 'u32[]', space=smem, size = 0x4, offset = 0x4, fixed_abs, tag = 'smem constant byte address 0x4 - core index']
  #allocation1 [shape = 'u32[144,128]{1,0:T(1,128)}', space=vmem, size = 0x12000, scoped, tag = 'internal scratch']
  #allocation2 [shape = 'f32[32,256]{1,0:T(8,128)}', space=vmem, size = 0x8000, scoped, tag = 'scratch operand']
  #allocation3 [shape = 'f32[64,128]{1,0:T(8,128)}', space=vmem, size = 0x8000, scoped, tag = 'scratch operand']
  %s0 = inlined_call_operand.vmem [shape: f32[2,3,256], index: 0, kind: input, shape index: {}]
  %s1 = inlined_call_operand.vmem [shape: f32[2,10,256], index: 1, kind: input, shape index: {}]
  %s2 = inlined_call_operand.vmem [shape: f32[2,6,256], index: 2, kind: input, shape index: {}]
  %s3 = inlined_call_operand.vmem [shape: bf16[32,32], index: 3, kind: input, shape index: {}]
  %s4 = inlined_call_operand.vmem [shape: f32[32,1], index: 4, kind: input, shape index: {}]
  %s5 = inlined_call_operand.vmem [shape: bf16[32,32], index: 5, kind: input, shape index: {}]
  %s6 = inlined_call_operand.vmem [shape: f32[32,1], index: 6, kind: input, shape index: {}]
  %s7 = inlined_call_operand.vmem [shape: bf16[64,32], index: 7, kind: input, shape index: {}]
  %s8 = inlined_call_operand.vmem [shape: f32[64,1], index: 8, kind: input, shape index: {}]
  %s9 = inlined_call_operand.vmem [shape: f32[1,2,64,1], index: 9, kind: output, shape index: {}]
  %s10 = sld [smem:[#allocation0]]
  $region77: #{surface_abstraction_cd.1} parent=0
    _
  %s12 = ssub.s32 1, %s10
  %s13 = scalar_select 0, %s12, %s10
  loop: start=0, step=1, limit=4
  $region2: #{surface_abstraction_cd.1} parent=0 // loop_pre_header
    _
  $region3: #{surface_abstraction_cd.1} parent=0 // loop_header
    %s15 = sphi 0, %s19
    %p16 = scmp.ge.s32.totalorder %s15, 4
    %s22 = sphi 0, %s41
    %s23 = sphi 0, %s37
    %s24 = sphi 0, %s33
    %s25 = sphi 0, %s22
    %s26 = sphi 0, %s23
    %s27 = sphi 0, %s24
    %s28 = sphi 0, %s25
    %s29 = sphi 0, %s26
    %s30 = sphi 0, %s27
    %s48 = sphi 0, %s50
    %s51 = sphi 0, %s48
    %s52 = sphi 0, %s51
    %s68 = sphi 0, %s52
    %s78 = sphi 0, %s80
    %s81 = sphi 0, %s78
    %s82 = sphi 0, %s81
    %s98 = sphi 0, %s82
    %s108 = sphi 0, %s110
    %s111 = sphi 0, %s108
    %s112 = sphi 0, %s111
    %s128 = sphi 0, %s112
    %s132 = sphi 0, %s132
    %s134 = sphi 0, %s132
    %s135 = sphi 0, %s134
    %s149 = sphi 0, %s135
    %s153 = sphi 0, %s153
    %s155 = sphi 0, %s153
    %s156 = sphi 0, %s155
    %s170 = sphi 0, %s156
    %s174 = sphi 0, %s174
    %s176 = sphi 0, %s174
    %s177 = sphi 0, %s176
    %s191 = sphi 0, %s177
    %s195 = sphi 0, %s195
    %s197 = sphi 0, %s195
    %s198 = sphi 0, %s197
    %s212 = sphi 0, %s198
    %s216 = sphi 0, %s216
    %s218 = sphi 0, %s216
    %s219 = sphi 0, %s218
    %s233 = sphi 0, %s219
    %s237 = sphi 0, %s237
    %s239 = sphi 0, %s237
    %s240 = sphi 0, %s239
    %s254 = sphi 0, %s240
    %s262 = sphi 0, %s264
    %s265 = sphi 0, %s262
    %s266 = sphi 0, %s265
    %s282 = sphi 0, %s266
  $region4: #{surface_abstraction_cd.1} parent=0 // loop_header_branch
    %18 = sbr.rel (%p16) target = $region8
  $region5: #{surface_abstraction_cd.1} parent=0 // loop_body
    %s20 = ssub.s32 %s15, 1
    %s21 = ssub.s32 %s15, 2
    %s31 = sadd.s32 1, %s24
    %p32 = scmp.ge.s32.totalorder %s31, 1
    %s33 = scalar_select %p32, 0, %s31
    %s34 = sadd.s32 1, %s23
    %s35 = scalar_select %p32, %s34, %s23
    %p36 = scmp.ge.s32.totalorder %s35, 2
    %s37 = scalar_select %p36, 0, %s35
    %s38 = sadd.s32 1, %s22
    %s39 = scalar_select %p36, %s38, %s22
    %p40 = scmp.ge.s32.totalorder %s39, 1
    %s41 = scalar_select %p40, 0, %s39
    %s42 = sadd.s32 %s22, %s24
    %s43 = sadd.s32 %s41, %s33
    %s44 = ssub.s32 %s23, %s37
    %s45 = ssub.s32 %s42, %s43
    %s46 = sor.u32 %s44, %s45
    %p47 = scmp.eq.s32.totalorder %s46, 0
    %s49 = sadd.s32 %s48, 1
    %s50 = scalar_select %p47, %s48, %s49
    %p53 = pneg %p47
    %p54 = scmp.eq.s32.totalorder %s15, 1
    %p55 = por %p53, %p54
    %p56 = scmp.ne.s32.totalorder %s48, %s51
    %p57 = scmp.eq.s32.totalorder %s15, 0
    %p58 = por %p56, %p57
    %p59 = scmp.ne.s32.totalorder %s48, %s51
    %p60 = scmp.eq.s32.totalorder %s20, 1
    %p61 = por %p59, %p60
    %p62 = scmp.ne.s32.totalorder %s51, %s52
    %p63 = scmp.eq.s32.totalorder %s20, 0
    %p64 = por %p62, %p63
    %p65 = scmp.ne.s32.totalorder %s51, %s52
    %p66 = scmp.eq.s32.totalorder %s21, 1
    %p67 = por %p65, %p66
    %p69 = scmp.ne.s32.totalorder %s52, %s68
    %p70 = scmp.eq.s32.totalorder %s21, 0
    %p71 = por %p69, %p70
    %s72 = sadd.s32 %s22, %s24
    %s73 = sadd.s32 %s41, %s33
    %s74 = ssub.s32 %s23, %s37
    %s75 = ssub.s32 %s72, %s73
    %s76 = sor.u32 %s74, %s75
    %p77 = scmp.eq.s32.totalorder %s76, 0
    %s79 = sadd.s32 %s78, 1
    %s80 = scalar_select %p77, %s78, %s79
    %p83 = pneg %p77
    %p84 = scmp.eq.s32.totalorder %s15, 1
    %p85 = por %p83, %p84
    %p86 = scmp.ne.s32.totalorder %s78, %s81
    %p87 = scmp.eq.s32.totalorder %s15, 0
    %p88 = por %p86, %p87
    %p89 = scmp.ne.s32.totalorder %s78, %s81
    %p90 = scmp.eq.s32.totalorder %s20, 1
    %p91 = por %p89, %p90
    %p92 = scmp.ne.s32.totalorder %s81, %s82
    %p93 = scmp.eq.s32.totalorder %s20, 0
    %p94 = por %p92, %p93
    %p95 = scmp.ne.s32.totalorder %s81, %s82
    %p96 = scmp.eq.s32.totalorder %s21, 1
    %p97 = por %p95, %p96
    %p99 = scmp.ne.s32.totalorder %s82, %s98
    %p100 = scmp.eq.s32.totalorder %s21, 0
    %p101 = por %p99, %p100
    %s102 = sadd.s32 %s22, %s24
    %s103 = sadd.s32 %s41, %s33
    %s104 = ssub.s32 %s23, %s37
    %s105 = ssub.s32 %s102, %s103
    %s106 = sor.u32 %s104, %s105
    %p107 = scmp.eq.s32.totalorder %s106, 0
    %s109 = sadd.s32 %s108, 1
    %s110 = scalar_select %p107, %s108, %s109
    %p113 = pneg %p107
    %p114 = scmp.eq.s32.totalorder %s15, 1
    %p115 = por %p113, %p114
    %p116 = scmp.ne.s32.totalorder %s108, %s111
    %p117 = scmp.eq.s32.totalorder %s15, 0
    %p118 = por %p116, %p117
    %p119 = scmp.ne.s32.totalorder %s108, %s111
    %p120 = scmp.eq.s32.totalorder %s20, 1
    %p121 = por %p119, %p120
    %p122 = scmp.ne.s32.totalorder %s111, %s112
    %p123 = scmp.eq.s32.totalorder %s20, 0
    %p124 = por %p122, %p123
    %p125 = scmp.ne.s32.totalorder %s111, %s112
    %p126 = scmp.eq.s32.totalorder %s21, 1
    %p127 = por %p125, %p126
    %p129 = scmp.ne.s32.totalorder %s112, %s128
    %p130 = scmp.eq.s32.totalorder %s21, 0
    %p131 = por %p129, %p130
    %s133 = sadd.s32 %s132, 1
    %p136 = scmp.eq.s32.totalorder %s15, 1
    %p137 = scmp.ne.s32.totalorder %s132, %s134
    %p138 = scmp.eq.s32.totalorder %s15, 0
    %p139 = por %p137, %p138
    %p140 = scmp.ne.s32.totalorder %s132, %s134
    %p141 = scmp.eq.s32.totalorder %s20, 1
    %p142 = por %p140, %p141
    %p143 = scmp.ne.s32.totalorder %s134, %s135
    %p144 = scmp.eq.s32.totalorder %s20, 0
    %p145 = por %p143, %p144
    %p146 = scmp.ne.s32.totalorder %s134, %s135
    %p147 = scmp.eq.s32.totalorder %s21, 1
    %p148 = por %p146, %p147
    %p150 = scmp.ne.s32.totalorder %s135, %s149
    %p151 = scmp.eq.s32.totalorder %s21, 0
    %p152 = por %p150, %p151
    %s154 = sadd.s32 %s153, 1
    %p157 = scmp.eq.s32.totalorder %s15, 1
    %p158 = scmp.ne.s32.totalorder %s153, %s155
    %p159 = scmp.eq.s32.totalorder %s15, 0
    %p160 = por %p158, %p159
    %p161 = scmp.ne.s32.totalorder %s153, %s155
    %p162 = scmp.eq.s32.totalorder %s20, 1
    %p163 = por %p161, %p162
    %p164 = scmp.ne.s32.totalorder %s155, %s156
    %p165 = scmp.eq.s32.totalorder %s20, 0
    %p166 = por %p164, %p165
    %p167 = scmp.ne.s32.totalorder %s155, %s156
    %p168 = scmp.eq.s32.totalorder %s21, 1
    %p169 = por %p167, %p168
    %p171 = scmp.ne.s32.totalorder %s156, %s170
    %p172 = scmp.eq.s32.totalorder %s21, 0
    %p173 = por %p171, %p172
    %s175 = sadd.s32 %s174, 1
    %p178 = scmp.eq.s32.totalorder %s15, 1
    %p179 = scmp.ne.s32.totalorder %s174, %s176
    %p180 = scmp.eq.s32.totalorder %s15, 0
    %p181 = por %p179, %p180
    %p182 = scmp.ne.s32.totalorder %s174, %s176
    %p183 = scmp.eq.s32.totalorder %s20, 1
    %p184 = por %p182, %p183
    %p185 = scmp.ne.s32.totalorder %s176, %s177
    %p186 = scmp.eq.s32.totalorder %s20, 0
    %p187 = por %p185, %p186
    %p188 = scmp.ne.s32.totalorder %s176, %s177
    %p189 = scmp.eq.s32.totalorder %s21, 1
    %p190 = por %p188, %p189
    %p192 = scmp.ne.s32.totalorder %s177, %s191
    %p193 = scmp.eq.s32.totalorder %s21, 0
    %p194 = por %p192, %p193
    %s196 = sadd.s32 %s195, 1
    %p199 = scmp.eq.s32.totalorder %s15, 1
    %p200 = scmp.ne.s32.totalorder %s195, %s197
    %p201 = scmp.eq.s32.totalorder %s15, 0
    %p202 = por %p200, %p201
    %p203 = scmp.ne.s32.totalorder %s195, %s197
    %p204 = scmp.eq.s32.totalorder %s20, 1
    %p205 = por %p203, %p204
    %p206 = scmp.ne.s32.totalorder %s197, %s198
    %p207 = scmp.eq.s32.totalorder %s20, 0
    %p208 = por %p206, %p207
    %p209 = scmp.ne.s32.totalorder %s197, %s198
    %p210 = scmp.eq.s32.totalorder %s21, 1
    %p211 = por %p209, %p210
    %p213 = scmp.ne.s32.totalorder %s198, %s212
    %p214 = scmp.eq.s32.totalorder %s21, 0
    %p215 = por %p213, %p214
    %s217 = sadd.s32 %s216, 1
    %p220 = scmp.eq.s32.totalorder %s15, 1
    %p221 = scmp.ne.s32.totalorder %s216, %s218
    %p222 = scmp.eq.s32.totalorder %s15, 0
    %p223 = por %p221, %p222
    %p224 = scmp.ne.s32.totalorder %s216, %s218
    %p225 = scmp.eq.s32.totalorder %s20, 1
    %p226 = por %p224, %p225
    %p227 = scmp.ne.s32.totalorder %s218, %s219
    %p228 = scmp.eq.s32.totalorder %s20, 0
    %p229 = por %p227, %p228
    %p230 = scmp.ne.s32.totalorder %s218, %s219
    %p231 = scmp.eq.s32.totalorder %s21, 1
    %p232 = por %p230, %p231
    %p234 = scmp.ne.s32.totalorder %s219, %s233
    %p235 = scmp.eq.s32.totalorder %s21, 0
    %p236 = por %p234, %p235
    %s238 = sadd.s32 %s237, 1
    %p241 = scmp.eq.s32.totalorder %s15, 1
    %p242 = scmp.ne.s32.totalorder %s237, %s239
    %p243 = scmp.eq.s32.totalorder %s15, 0
    %p244 = por %p242, %p243
    %p245 = scmp.ne.s32.totalorder %s237, %s239
    %p246 = scmp.eq.s32.totalorder %s20, 1
    %p247 = por %p245, %p246
    %p248 = scmp.ne.s32.totalorder %s239, %s240
    %p249 = scmp.eq.s32.totalorder %s20, 0
    %p250 = por %p248, %p249
    %p251 = scmp.ne.s32.totalorder %s239, %s240
    %p252 = scmp.eq.s32.totalorder %s21, 1
    %p253 = por %p251, %p252
    %p255 = scmp.ne.s32.totalorder %s240, %s254
    %p256 = scmp.eq.s32.totalorder %s21, 0
    %p257 = por %p255, %p256
    %s258 = ssub.s32 %s22, %s41
    %s259 = ssub.s32 %s23, %s37
    %s260 = sor.u32 %s258, %s259
    %p261 = scmp.eq.s32.totalorder %s260, 0
    %s263 = sadd.s32 %s262, 1
    %s264 = scalar_select %p261, %s262, %s263
    %p267 = pneg %p261
    %p268 = scmp.eq.s32.totalorder %s15, 1
    %p269 = por %p267, %p268
    %p270 = scmp.ne.s32.totalorder %s262, %s265
    %p271 = scmp.eq.s32.totalorder %s15, 0
    %p272 = por %p270, %p271
    %p273 = scmp.ne.s32.totalorder %s262, %s265
    %p274 = scmp.eq.s32.totalorder %s20, 1
    %p275 = por %p273, %p274
    %p276 = scmp.ne.s32.totalorder %s265, %s266
    %p277 = scmp.eq.s32.totalorder %s20, 0
    %p278 = por %p276, %p277
    %p279 = scmp.ne.s32.totalorder %s265, %s266
    %p280 = scmp.eq.s32.totalorder %s21, 1
    %p281 = por %p279, %p280
    %p283 = scmp.ne.s32.totalorder %s266, %s282
    %p284 = scmp.eq.s32.totalorder %s21, 0
    %p285 = por %p283, %p284
    %p286 = scmp.le.s32.totalorder 1, %s15
    %p287 = scmp.lt.s32.totalorder %s15, 3
    %p288 = pnand %p286, %p287
    %p289 = pneg %p288
    // Predicated region
    $region9: #{surface_abstraction_cd.1} parent=5 // pred_check
      _
    $region10: #{surface_abstraction_cd.1} parent=5 // pred_check_branch
      %291 = sbr.rel (%p288) target = $region12
    $region11: #{surface_abstraction_cd.1} parent=5 // pred_region
      %s292 = ssub.s32 %s15, 1
      // Predicated region
      $region13: #{surface_abstraction_cd.1} parent=11 // pred_check
        %p293 = pneg %p145
      $region14: #{surface_abstraction_cd.1} parent=11 // pred_check_branch
        %295 = sbr.rel (%p293) target = $region16
      $region15: #{surface_abstraction_cd.1} parent=11 // pred_region
        _
      $region16: #{surface_abstraction_cd.1} parent=11 // pred_fallthru
        _
      // Predicated region
      $region17: #{surface_abstraction_cd.1} parent=11 // pred_check
        %p296 = pneg %p166
      $region18: #{surface_abstraction_cd.1} parent=11 // pred_check_branch
        %298 = sbr.rel (%p296) target = $region20
      $region19: #{surface_abstraction_cd.1} parent=11 // pred_region
        _
      $region20: #{surface_abstraction_cd.1} parent=11 // pred_fallthru
        _
      // Predicated region
      $region21: #{surface_abstraction_cd.1} parent=11 // pred_check
        %p299 = pneg %p187
      $region22: #{surface_abstraction_cd.1} parent=11 // pred_check_branch
        %301 = sbr.rel (%p299) target = $region24
      $region23: #{surface_abstraction_cd.1} parent=11 // pred_region
        _
      $region24: #{surface_abstraction_cd.1} parent=11 // pred_fallthru
        _
      // Predicated region
      $region25: #{surface_abstraction_cd.1} parent=11 // pred_check
        %p302 = pneg %p208
      $region26: #{surface_abstraction_cd.1} parent=11 // pred_check_branch
        %304 = sbr.rel (%p302) target = $region28
      $region27: #{surface_abstraction_cd.1} parent=11 // pred_region
        _
      $region28: #{surface_abstraction_cd.1} parent=11 // pred_fallthru
        _
      // Predicated region
      $region29: #{surface_abstraction_cd.1} parent=11 // pred_check
        %p305 = pneg %p229
      $region30: #{surface_abstraction_cd.1} parent=11 // pred_check_branch
        %307 = sbr.rel (%p305) target = $region32
      $region31: #{surface_abstraction_cd.1} parent=11 // pred_region
        _
      $region32: #{surface_abstraction_cd.1} parent=11 // pred_fallthru
        _
      // Predicated region
      $region33: #{surface_abstraction_cd.1} parent=11 // pred_check
        %p308 = pneg %p250
      $region34: #{surface_abstraction_cd.1} parent=11 // pred_check_branch
        %310 = sbr.rel (%p308) target = $region36
      $region35: #{surface_abstraction_cd.1} parent=11 // pred_region
        _
      $region36: #{surface_abstraction_cd.1} parent=11 // pred_fallthru
        _
    $region12: #{surface_abstraction_cd.1} parent=5 // pred_fallthru
      _
    %p311 = scmp.lt.s32.totalorder %s15, 2
    // Predicated region
    $region37: #{surface_abstraction_cd.1} parent=5 // pred_check
      %p312 = pneg %p311
    $region38: #{surface_abstraction_cd.1} parent=5 // pred_check_branch
      %314 = sbr.rel (%p312) target = $region40
    $region39: #{surface_abstraction_cd.1} parent=5 // pred_region
      // Predicated region
      $region41: #{surface_abstraction_cd.1} parent=39 // pred_check
        %p315 = pneg %p58
      $region42: #{surface_abstraction_cd.1} parent=39 // pred_check_branch
        %317 = sbr.rel (%p315) target = $region44
      $region43: #{surface_abstraction_cd.1} parent=39 // pred_region
        %s318 = sadd.s32 %s22, %s24
        %s319 = smul.u32 2, %s318
        %p320 = scmp.lt.s32.totalorder %s23, 1
        %s321 = scalar_select %p320, %s23, 1
        %p322 = scmp.lt.s32.totalorder %s319, 1
        %s323 = scalar_select %p322, %s319, 1
        %s324 = smul.addr %s321, 2
        %s325 = sadd.s32 %s323, %s324
        %s326 = smul.addr %s325, 4
        %s327 = scalar_lea.vmem %s0, %s326
        %s328 = sadd.s32 %s22, %s24
        %s329 = smul.u32 2, %s328
      $region44: #{surface_abstraction_cd.1} parent=39 // pred_fallthru
        _
      // Predicated region
      $region45: #{surface_abstraction_cd.1} parent=39 // pred_check
        %p330 = pneg %p88
      $region46: #{surface_abstraction_cd.1} parent=39 // pred_check_branch
        %332 = sbr.rel (%p330) target = $region48
      $region47: #{surface_abstraction_cd.1} parent=39 // pred_region
        %s333 = sadd.s32 %s22, %s24
        %s334 = smul.u32 2, %s333
        %p335 = scmp.lt.s32.totalorder %s23, 1
        %s336 = scalar_select %p335, %s23, 1
        %p337 = scmp.lt.s32.totalorder %s334, 1
        %s338 = scalar_select %p337, %s334, 1
        %s339 = smul.addr %s336, 4
        %s340 = sadd.s32 %s338, %s339
        %s341 = smul.addr %s340, 8
        %s342 = scalar_lea.vmem %s1, %s341
        %s343 = sadd.s32 %s22, %s24
        %s344 = smul.u32 2, %s343
      $region48: #{surface_abstraction_cd.1} parent=39 // pred_fallthru
        _
      // Predicated region
      $region49: #{surface_abstraction_cd.1} parent=39 // pred_check
        %p345 = pneg %p118
      $region50: #{surface_abstraction_cd.1} parent=39 // pred_check_branch
        %347 = sbr.rel (%p345) target = $region52
      $region51: #{surface_abstraction_cd.1} parent=39 // pred_region
        %s348 = sadd.s32 %s22, %s24
        %s349 = smul.u32 2, %s348
        %p350 = scmp.lt.s32.totalorder %s23, 1
        %s351 = scalar_select %p350, %s23, 1
        %p352 = scmp.lt.s32.totalorder %s349, 1
        %s353 = scalar_select %p352, %s349, 1
        %s354 = smul.addr %s351, 2
        %s355 = sadd.s32 %s353, %s354
        %s356 = smul.addr %s355, 8
        %s357 = scalar_lea.vmem %s2, %s356
        %s358 = sadd.s32 %s22, %s24
        %s359 = smul.u32 2, %s358
      $region52: #{surface_abstraction_cd.1} parent=39 // pred_fallthru
        _
    $region40: #{surface_abstraction_cd.1} parent=5 // pred_fallthru
      _
    %p360 = scmp.le.s32.totalorder 1, %s15
    %p361 = scmp.lt.s32.totalorder %s15, 3
    %p362 = pnand %p360, %p361
    %p363 = pneg %p362
    // Predicated region
    $region53: #{surface_abstraction_cd.1} parent=5 // pred_check
      _
    $region54: #{surface_abstraction_cd.1} parent=5 // pred_check_branch
      %365 = sbr.rel (%p362) target = $region56
    $region55: #{surface_abstraction_cd.1} parent=5 // pred_region
      %s366 = ssub.s32 %s15, 1
      %s367 = sadd.s32 %s25, %s27
      %s368 = smul.u32 2, %s367
      %p369 = scmp.lt.s32.totalorder %s26, 1
      %s370 = scalar_select %p369, %s26, 1
      %p371 = scmp.lt.s32.totalorder %s368, 1
      %s372 = scalar_select %p371, %s368, 1
      %s373 = smul.addr %s370, 2
      %s374 = sadd.s32 %s372, %s373
      %s375 = smul.addr %s374, 4
      %s376 = scalar_lea.vmem %s0, %s375
      %p377 = pneg %p64
      %p378 = pneg %p61
      %s379 = sadd.s32 %s25, %s27
      %s380 = smul.u32 2, %s379
      %p381 = scmp.lt.s32.totalorder %s26, 1
      %s382 = scalar_select %p381, %s26, 1
      %p383 = scmp.lt.s32.totalorder %s380, 1
      %s384 = scalar_select %p383, %s380, 1
      %s385 = smul.addr %s382, 4
      %s386 = sadd.s32 %s384, %s385
      %s387 = smul.addr %s386, 8
      %s388 = scalar_lea.vmem %s1, %s387
      %p389 = pneg %p94
      %p390 = pneg %p91
      %s391 = sadd.s32 %s25, %s27
      %s392 = smul.u32 2, %s391
      %p393 = scmp.lt.s32.totalorder %s26, 1
      %s394 = scalar_select %p393, %s26, 1
      %p395 = scmp.lt.s32.totalorder %s392, 1
      %s396 = scalar_select %p395, %s392, 1
      %s397 = smul.addr %s394, 2
      %s398 = sadd.s32 %s396, %s397
      %s399 = smul.addr %s398, 8
      %s400 = scalar_lea.vmem %s2, %s399
      %p401 = pneg %p124
      %p402 = pneg %p121
      %p403 = pneg %p145
      %p404 = pneg %p142
      %p405 = pneg %p166
      %p406 = pneg %p163
      %p407 = pneg %p187
      %p408 = pneg %p184
      %p409 = pneg %p208
      %p410 = pneg %p205
      %p411 = pneg %p229
      %p412 = pneg %p226
      %p413 = pneg %p250
      %p414 = pneg %p247
      %p415 = pneg %p278
      %p416 = pneg %p275
      %p417 = scmp.lt.s32.totalorder %s25, 0
      %s418 = scalar_select %p417, %s25, 0
      %p419 = scmp.lt.s32.totalorder %s26, 1
      %s420 = scalar_select %p419, %s26, 1
      %s421 = smul.addr %s420, 8
      %s422 = smul.addr %s418, 16
      %s423 = sadd.s32 %s421, %s422
      %s424 = smul.addr %s423, 8
      %s425 = scalar_lea.vmem %s9, %s424
      %s426 = sadd.s32 %s25, %s27
      %s427 = smul.u32 2, %s426
      %p428 = scmp.lt.s32.totalorder %s26, 1
      %s429 = scalar_select %p428, %s26, 1
      %p430 = scmp.lt.s32.totalorder %s427, 1
      %s431 = scalar_select %p430, %s427, 1
      %s432 = smul.addr %s429, 2
      %s433 = sadd.s32 %s431, %s432
      %s434 = smul.addr %s433, 4
      %s435 = scalar_lea.vmem %s0, %s434
      %s436 = sadd.s32 %s25, %s27
      %s437 = smul.u32 2, %s436
      %s438 = sadd.s32 %s25, %s27
      %s439 = smul.u32 2, %s438
      %p440 = scmp.lt.s32.totalorder %s26, 1
      %s441 = scalar_select %p440, %s26, 1
      %p442 = scmp.lt.s32.totalorder %s439, 1
      %s443 = scalar_select %p442, %s439, 1
      %s444 = smul.addr %s441, 4
      %s445 = sadd.s32 %s443, %s444
      %s446 = smul.addr %s445, 8
      %s447 = scalar_lea.vmem %s1, %s446
      %s448 = sadd.s32 %s25, %s27
      %s449 = smul.u32 2, %s448
      %s450 = sadd.s32 %s25, %s27
      %s451 = smul.u32 2, %s450
      %p452 = scmp.lt.s32.totalorder %s26, 1
      %s453 = scalar_select %p452, %s26, 1
      %p454 = scmp.lt.s32.totalorder %s451, 1
      %s455 = scalar_select %p454, %s451, 1
      %s456 = smul.addr %s453, 2
      %s457 = sadd.s32 %s455, %s456
      %s458 = smul.addr %s457, 8
      %s459 = scalar_lea.vmem %s2, %s458
      %s460 = sadd.s32 %s25, %s27
      %s461 = smul.u32 2, %s460
      %p462 = scmp.lt.s32.totalorder %s25, 0
      %s463 = scalar_select %p462, %s25, 0
      %p464 = scmp.lt.s32.totalorder %s26, 1
      %s465 = scalar_select %p464, %s26, 1
      %s466 = smul.addr %s465, 8
      %s467 = smul.addr %s463, 16
      %s468 = sadd.s32 %s466, %s467
      %s469 = smul.addr %s468, 8
      %s470 = scalar_lea.vmem %s9, %s469
      %p472 = scmp.eq.s32.totalorder %s27, 0
      // Predicated region
      $region57: #{surface_abstraction_cd.1} parent=55 // pred_check
        %p473 = pneg %p472
      $region58: #{surface_abstraction_cd.1} parent=55 // pred_check_branch
        %475 = sbr.rel (%p473) target = $region60
      $region59: #{surface_abstraction_cd.1} parent=55 // pred_region
        %476 = vst [vmem:[#allocation2] sm:$0xff] 0.0
        %477 = vst [vmem:[#allocation2 + $0x8] sm:$0xff] 0.0
        %478 = vst [vmem:[#allocation2 + $0x10] sm:$0xff] 0.0
        %479 = vst [vmem:[#allocation2 + $0x18] sm:$0xff] 0.0
        %480 = vst [vmem:[#allocation2 + $0x20] sm:$0xff] 0.0
        %481 = vst [vmem:[#allocation2 + $0x28] sm:$0xff] 0.0
        %482 = vst [vmem:[#allocation2 + $0x30] sm:$0xff] 0.0
        %483 = vst [vmem:[#allocation2 + $0x38] sm:$0xff] 0.0
        %484 = vst [vmem:[#allocation3] sm:$0xff] 0.0
        %485 = vst [vmem:[#allocation3 + $0x8] sm:$0xff] 0.0
        %486 = vst [vmem:[#allocation3 + $0x10] sm:$0xff] 0.0
        %487 = vst [vmem:[#allocation3 + $0x18] sm:$0xff] 0.0
        %488 = vst [vmem:[#allocation3 + $0x20] sm:$0xff] 0.0
        %489 = vst [vmem:[#allocation3 + $0x28] sm:$0xff] 0.0
        %490 = vst [vmem:[#allocation3 + $0x30] sm:$0xff] 0.0
        %491 = vst [vmem:[#allocation3 + $0x38] sm:$0xff] 0.0
      $region60: #{surface_abstraction_cd.1} parent=55 // pred_fallthru
        _
      %v492 = vld [vmem:[%s435] sm:$0x77]
      %v494 = vcombine.high %v492, %v492
      %496 = vst [vmem:[#allocation2] sm:$0x7] %v492
      %497 = vst [vmem:[#allocation2 + $0x8] sm:$0x7] %v494
      %v498 = vld [vmem:[%s447] sm:$0xff]
      %v499 = vld [vmem:[%s447 + $0x8] sm:$0xff]
      %v500 = vld [vmem:[%s447 + $0x10] sm:$0x3]
      %v501 = vld [vmem:[%s447 + $0x18] sm:$0x3]
      %502 = vst [vmem:[#allocation2 + $0x10] sm:$0xff] %v498
      %503 = vst [vmem:[#allocation2 + $0x18] sm:$0xff] %v499
      %504 = vst [vmem:[#allocation2 + $0x20] sm:$0x3] %v500
      %505 = vst [vmem:[#allocation2 + $0x28] sm:$0x3] %v501
      %v506 = vld [vmem:[%s459] sm:$0x3f]
      %v507 = vld [vmem:[%s459 + $0x8] sm:$0x3f]
      %508 = vst [vmem:[#allocation2 + $0x30] sm:$0x3f] %v506
      %509 = vst [vmem:[#allocation2 + $0x38] sm:$0x3f] %v507
      %v510 = vld [vmem:[#allocation2] sm:$0xff]
      %v511 = vld [vmem:[#allocation2 + $0x8] sm:$0xff]
      %v512 = vld [vmem:[#allocation2 + $0x10] sm:$0xff]
      %v513 = vld [vmem:[#allocation2 + $0x18] sm:$0xff]
      %v514 = vld [vmem:[#allocation2 + $0x20] sm:$0xff]
      %v515 = vld [vmem:[#allocation2 + $0x28] sm:$0xff]
      %v516 = vld [vmem:[#allocation2 + $0x30] sm:$0xff]
      %v517 = vld [vmem:[#allocation2 + $0x38] sm:$0xff]
      %v518 = vpack.c.bf16 %v512, %v510
      %v519 = vpack.c.bf16 %v513, %v511
      %v520 = vpack.c.bf16 %v516, %v514
      %v521 = vpack.c.bf16 %v517, %v515
      %v522 = vld [vmem:[%s3] sm:$0xf]
      %v523 = vld [vmem:[%s3 + $0x4] sm:$0xf]
      %v524 = vld [vmem:[%s3 + $0x8] sm:$0xf]
      %v525 = vld [vmem:[%s3 + $0xc] sm:$0xf]
      %v526 = vld [vmem:[%s4] sm:$0xff]
      %v527 = vld [vmem:[%s4 + $0x8] sm:$0xff]
      %v528 = vld [vmem:[%s4 + $0x10] sm:$0xff]
      %v529 = vld [vmem:[%s4 + $0x18] sm:$0xff]
      %531 = vset.pattern.permute.xlu0 0
      %532 = vperm.xlu0 %531, %v526
      %v533 = vpop.permute.xlu0 %532
      %536 = vset.pattern.permute.xlu0 0
      %537 = vperm.xlu0 %536, %v527
      %v538 = vpop.permute.xlu0 %537
      %541 = vset.pattern.permute.xlu0 0
      %542 = vperm.xlu0 %541, %v528
      %v543 = vpop.permute.xlu0 %542
      %546 = vset.pattern.permute.xlu0 0
      %547 = vperm.xlu0 %546, %v529
      %v548 = vpop.permute.xlu0 %547
      %v554 = vunpack.c.l.b16 %v522
      %v555 = vunpack.c.l.b16 %v523
      %v556 = vunpack.c.l.b16 %v524
      %v557 = vunpack.c.l.b16 %v525
      %v558 = vpack.c.b16 %v555, %v554
      %v559 = vpack.c.b16 %v557, %v556
      %vm560 = vcmask 261120
      %v562 = vsel %vm560, %v558, 0
      %v565 = vsel %vm560, %v559, 0
      %567 = vmatprep.subr.bf16.mxu0 %v519
      %568 = vmatpush1.bf16.msra.mxu0 %v518
      %569 = vmatprep.subr.bf16.mxu0 %v521
      %570 = vmatpush1.bf16.msra.mxu0 %v520
      %571 = vmatprep.subr.bf16.mxu0 0
      %572 = vmatpush1.bf16.msra.mxu0 0
      %573 = vmatprep.subr.bf16.mxu0 0
      %574 = vmatpush1.bf16.msra.mxu0 0
      %575 = vmatprep.subr.bf16.mxu0 0
      %576 = vmatpush1.bf16.msra.mxu0 0
      %577 = vmatprep.subr.bf16.mxu0 0
      %578 = vmatpush1.bf16.msra.mxu0 0
      %579 = vmatprep.subr.bf16.mxu0 0
      %580 = vmatpush1.bf16.msra.mxu0 0
      %581 = vmatprep.subr.bf16.mxu0 0
      %582 = vmatpush1.bf16.msra.mxu0 0
      %583 = vmatprep.subr.bf16.mxu0 0
      %584 = vmatpush1.bf16.msra.mxu0 0
      %585 = vmatprep.subr.bf16.mxu0 0
      %586 = vmatpush1.bf16.msra.mxu0 0
      %587 = vmatprep.subr.bf16.mxu0 0
      %588 = vmatpush1.bf16.msra.mxu0 0
      %589 = vmatprep.subr.bf16.mxu0 0
      %590 = vmatpush1.bf16.msra.mxu0 0
      %591 = vmatprep.subr.bf16.mxu0 0
      %592 = vmatpush1.bf16.msra.mxu0 0
      %593 = vmatprep.subr.bf16.mxu0 0
      %594 = vmatpush1.bf16.msra.mxu0 0
      %595 = vmatprep.subr.bf16.mxu0 0
      %596 = vmatpush1.bf16.msra.mxu0 0
      %597 = vmatprep.subr.bf16.mxu0 0
      %598 = vmatpush1.bf16.msra.mxu0 0
      %599 = vmatprep.mubr.bf16.mxu0 0
      %600 = vmatmul.mubr.bf16.gmra.mrb[0].mxu0 %v562
      %v601 = vpop.f32.mrb[0].mxu0
      %v602 = vadd.f32 %v533, %v601
      %v603 = vpop.f32.mrb[0].mxu0
      %v604 = vadd.f32 %v533, %v603
      %v605 = vpop.f32.mrb[0].mxu0
      %v606 = vadd.f32 %v538, %v605
      %v607 = vpop.f32.mrb[0].mxu0
      %v608 = vadd.f32 %v538, %v607
      %609 = vmatprep.mubr.bf16.mxu0 0
      %610 = vmatmul.mubr.bf16.gmra.mrb[0].mxu0 %v565
      %v611 = vpop.f32.mrb[0].mxu0
      %v612 = vadd.f32 %v543, %v611
      %v613 = vpop.f32.mrb[0].mxu0
      %v614 = vadd.f32 %v543, %v613
      %v615 = vpop.f32.mrb[0].mxu0
      %v616 = vadd.f32 %v548, %v615
      %v617 = vpop.f32.mrb[0].mxu0
      %v618 = vadd.f32 %v548, %v617
      %619 = vdwg.mxu0
      %v620 = vmax.f32 %v602, 0.0
      %v621 = vmax.f32 %v604, 0.0
      %v622 = vmax.f32 %v606, 0.0
      %v623 = vmax.f32 %v608, 0.0
      %v624 = vmax.f32 %v612, 0.0
      %v625 = vmax.f32 %v614, 0.0
      %v626 = vmax.f32 %v616, 0.0
      %v627 = vmax.f32 %v618, 0.0
      %v628 = vld [vmem:[%s5] sm:$0xf]
      %v629 = vld [vmem:[%s5 + $0x4] sm:$0xf]
      %v630 = vld [vmem:[%s5 + $0x8] sm:$0xf]
      %v631 = vld [vmem:[%s5 + $0xc] sm:$0xf]
      %v632 = vpack.c.bf16 %v622, %v620
      %v633 = vpack.c.bf16 %v623, %v621
      %v634 = vpack.c.bf16 %v626, %v624
      %v635 = vpack.c.bf16 %v627, %v625
      %v636 = vld [vmem:[%s6] sm:$0xff]
      %v637 = vld [vmem:[%s6 + $0x8] sm:$0xff]
      %v638 = vld [vmem:[%s6 + $0x10] sm:$0xff]
      %v639 = vld [vmem:[%s6 + $0x18] sm:$0xff]
      %641 = vset.pattern.permute.xlu0 0
      %642 = vperm.xlu0 %641, %v636
      %v643 = vpop.permute.xlu0 %642
      %646 = vset.pattern.permute.xlu0 0
      %647 = vperm.xlu0 %646, %v637
      %v648 = vpop.permute.xlu0 %647
      %651 = vset.pattern.permute.xlu0 0
      %652 = vperm.xlu0 %651, %v638
      %v653 = vpop.permute.xlu0 %652
      %656 = vset.pattern.permute.xlu0 0
      %657 = vperm.xlu0 %656, %v639
      %v658 = vpop.permute.xlu0 %657
      %v664 = vunpack.c.l.b16 %v628
      %v665 = vunpack.c.l.b16 %v629
      %v666 = vunpack.c.l.b16 %v630
      %v667 = vunpack.c.l.b16 %v631
      %v668 = vpack.c.b16 %v665, %v664
      %v669 = vpack.c.b16 %v667, %v666
      %v671 = vsel %vm560, %v668, 0
      %v674 = vsel %vm560, %v669, 0
      %676 = vmatprep.subr.bf16.mxu0 %v633
      %677 = vmatpush1.bf16.msra.mxu0 %v632
      %678 = vmatprep.subr.bf16.mxu0 %v635
      %679 = vmatpush1.bf16.msra.mxu0 %v634
      %680 = vmatprep.subr.bf16.mxu0 0
      %681 = vmatpush1.bf16.msra.mxu0 0
      %682 = vmatprep.subr.bf16.mxu0 0
      %683 = vmatpush1.bf16.msra.mxu0 0
      %684 = vmatprep.subr.bf16.mxu0 0
      %685 = vmatpush1.bf16.msra.mxu0 0
      %686 = vmatprep.subr.bf16.mxu0 0
      %687 = vmatpush1.bf16.msra.mxu0 0
      %688 = vmatprep.subr.bf16.mxu0 0
      %689 = vmatpush1.bf16.msra.mxu0 0
      %690 = vmatprep.subr.bf16.mxu0 0
      %691 = vmatpush1.bf16.msra.mxu0 0
      %692 = vmatprep.subr.bf16.mxu0 0
      %693 = vmatpush1.bf16.msra.mxu0 0
      %694 = vmatprep.subr.bf16.mxu0 0
      %695 = vmatpush1.bf16.msra.mxu0 0
      %696 = vmatprep.subr.bf16.mxu0 0
      %697 = vmatpush1.bf16.msra.mxu0 0
      %698 = vmatprep.subr.bf16.mxu0 0
      %699 = vmatpush1.bf16.msra.mxu0 0
      %700 = vmatprep.subr.bf16.mxu0 0
      %701 = vmatpush1.bf16.msra.mxu0 0
      %702 = vmatprep.subr.bf16.mxu0 0
      %703 = vmatpush1.bf16.msra.mxu0 0
      %704 = vmatprep.subr.bf16.mxu0 0
      %705 = vmatpush1.bf16.msra.mxu0 0
      %706 = vmatprep.subr.bf16.mxu0 0
      %707 = vmatpush1.bf16.msra.mxu0 0
      %708 = vmatprep.mubr.bf16.mxu0 0
      %709 = vmatmul.mubr.bf16.gmra.mrb[0].mxu0 %v671
      %v710 = vpop.f32.mrb[0].mxu0
      %v711 = vadd.f32 %v643, %v710
      %v712 = vpop.f32.mrb[0].mxu0
      %v713 = vadd.f32 %v643, %v712
      %v714 = vpop.f32.mrb[0].mxu0
      %v715 = vadd.f32 %v648, %v714
      %v716 = vpop.f32.mrb[0].mxu0
      %v717 = vadd.f32 %v648, %v716
      %718 = vmatprep.mubr.bf16.mxu0 0
      %719 = vmatmul.mubr.bf16.gmra.mrb[0].mxu0 %v674
      %v720 = vpop.f32.mrb[0].mxu0
      %v721 = vadd.f32 %v653, %v720
      %v722 = vpop.f32.mrb[0].mxu0
      %v723 = vadd.f32 %v653, %v722
      %v724 = vpop.f32.mrb[0].mxu0
      %v725 = vadd.f32 %v658, %v724
      %v726 = vpop.f32.mrb[0].mxu0
      %v727 = vadd.f32 %v658, %v726
      %728 = vdwg.mxu0
      %v729 = vmax.f32 %v711, 0.0
      %v730 = vmax.f32 %v713, 0.0
      %v731 = vmax.f32 %v715, 0.0
      %v732 = vmax.f32 %v717, 0.0
      %v733 = vmax.f32 %v721, 0.0
      %v734 = vmax.f32 %v723, 0.0
      %v735 = vmax.f32 %v725, 0.0
      %v736 = vmax.f32 %v727, 0.0
      %v737 = vld [vmem:[%s7] sm:$0xf]
      %v738 = vld [vmem:[%s7 + $0x4] sm:$0xf]
      %v739 = vld [vmem:[%s7 + $0x8] sm:$0xf]
      %v740 = vld [vmem:[%s7 + $0xc] sm:$0xf]
      %v741 = vld [vmem:[%s7 + $0x10] sm:$0xf]
      %v742 = vld [vmem:[%s7 + $0x14] sm:$0xf]
      %v743 = vld [vmem:[%s7 + $0x18] sm:$0xf]
      %v744 = vld [vmem:[%s7 + $0x1c] sm:$0xf]
      %v745 = vpack.c.bf16 %v731, %v729
      %v746 = vpack.c.bf16 %v732, %v730
      %v747 = vpack.c.bf16 %v735, %v733
      %v748 = vpack.c.bf16 %v736, %v734
      %v749 = vld [vmem:[%s8] sm:$0xff]
      %v750 = vld [vmem:[%s8 + $0x8] sm:$0xff]
      %v751 = vld [vmem:[%s8 + $0x10] sm:$0xff]
      %v752 = vld [vmem:[%s8 + $0x18] sm:$0xff]
      %v753 = vld [vmem:[%s8 + $0x20] sm:$0xff]
      %v754 = vld [vmem:[%s8 + $0x28] sm:$0xff]
      %v755 = vld [vmem:[%s8 + $0x30] sm:$0xff]
      %v756 = vld [vmem:[%s8 + $0x38] sm:$0xff]
      %758 = vset.pattern.permute.xlu0 0
      %759 = vperm.xlu0 %758, %v749
      %v760 = vpop.permute.xlu0 %759
      %763 = vset.pattern.permute.xlu0 0
      %764 = vperm.xlu0 %763, %v750
      %v765 = vpop.permute.xlu0 %764
      %768 = vset.pattern.permute.xlu0 0
      %769 = vperm.xlu0 %768, %v751
      %v770 = vpop.permute.xlu0 %769
      %773 = vset.pattern.permute.xlu0 0
      %774 = vperm.xlu0 %773, %v752
      %v775 = vpop.permute.xlu0 %774
      %778 = vset.pattern.permute.xlu0 0
      %779 = vperm.xlu0 %778, %v753
      %v780 = vpop.permute.xlu0 %779
      %783 = vset.pattern.permute.xlu0 0
      %784 = vperm.xlu0 %783, %v754
      %v785 = vpop.permute.xlu0 %784
      %788 = vset.pattern.permute.xlu0 0
      %789 = vperm.xlu0 %788, %v755
      %v790 = vpop.permute.xlu0 %789
      %793 = vset.pattern.permute.xlu0 0
      %794 = vperm.xlu0 %793, %v756
      %v795 = vpop.permute.xlu0 %794
      %v805 = vunpack.c.l.b16 %v737
      %v806 = vunpack.c.l.b16 %v738
      %v807 = vunpack.c.l.b16 %v739
      %v808 = vunpack.c.l.b16 %v740
      %v809 = vunpack.c.l.b16 %v741
      %v810 = vunpack.c.l.b16 %v742
      %v811 = vunpack.c.l.b16 %v743
      %v812 = vunpack.c.l.b16 %v744
      %v813 = vpack.c.b16 %v806, %v805
      %v814 = vpack.c.b16 %v808, %v807
      %v815 = vpack.c.b16 %v810, %v809
      %v816 = vpack.c.b16 %v812, %v811
      %v818 = vsel %vm560, %v813, 0
      %v821 = vsel %vm560, %v814, 0
      %v824 = vsel %vm560, %v815, 0
      %v827 = vsel %vm560, %v816, 0
      %829 = vmatprep.subr.bf16.mxu0 %v746
      %830 = vmatpush1.bf16.msra.mxu0 %v745
      %831 = vmatprep.subr.bf16.mxu0 %v748
      %832 = vmatpush1.bf16.msra.mxu0 %v747
      %833 = vmatprep.subr.bf16.mxu0 0
      %834 = vmatpush1.bf16.msra.mxu0 0
      %835 = vmatprep.subr.bf16.mxu0 0
      %836 = vmatpush1.bf16.msra.mxu0 0
      %837 = vmatprep.subr.bf16.mxu0 0
      %838 = vmatpush1.bf16.msra.mxu0 0
      %839 = vmatprep.subr.bf16.mxu0 0
      %840 = vmatpush1.bf16.msra.mxu0 0
      %841 = vmatprep.subr.bf16.mxu0 0
      %842 = vmatpush1.bf16.msra.mxu0 0
      %843 = vmatprep.subr.bf16.mxu0 0
      %844 = vmatpush1.bf16.msra.mxu0 0
      %845 = vmatprep.subr.bf16.mxu0 0
      %846 = vmatpush1.bf16.msra.mxu0 0
      %847 = vmatprep.subr.bf16.mxu0 0
      %848 = vmatpush1.bf16.msra.mxu0 0
      %849 = vmatprep.subr.bf16.mxu0 0
      %850 = vmatpush1.bf16.msra.mxu0 0
      %851 = vmatprep.subr.bf16.mxu0 0
      %852 = vmatpush1.bf16.msra.mxu0 0
      %853 = vmatprep.subr.bf16.mxu0 0
      %854 = vmatpush1.bf16.msra.mxu0 0
      %855 = vmatprep.subr.bf16.mxu0 0
      %856 = vmatpush1.bf16.msra.mxu0 0
      %857 = vmatprep.subr.bf16.mxu0 0
      %858 = vmatpush1.bf16.msra.mxu0 0
      %859 = vmatprep.subr.bf16.mxu0 0
      %860 = vmatpush1.bf16.msra.mxu0 0
      %861 = vmatprep.mubr.bf16.mxu0 0
      %862 = vmatmul.mubr.bf16.gmra.mrb[0].mxu0 %v818
      %v863 = vpop.f32.mrb[0].mxu0
      %v864 = vadd.f32 %v760, %v863
      %v865 = vpop.f32.mrb[0].mxu0
      %v866 = vadd.f32 %v760, %v865
      %v867 = vpop.f32.mrb[0].mxu0
      %v868 = vadd.f32 %v765, %v867
      %v869 = vpop.f32.mrb[0].mxu0
      %v870 = vadd.f32 %v765, %v869
      %871 = vmatprep.mubr.bf16.mxu0 0
      %872 = vmatmul.mubr.bf16.gmra.mrb[0].mxu0 %v821
      %v873 = vpop.f32.mrb[0].mxu0
      %v874 = vadd.f32 %v770, %v873
      %v875 = vpop.f32.mrb[0].mxu0
      %v876 = vadd.f32 %v770, %v875
      %v877 = vpop.f32.mrb[0].mxu0
      %v878 = vadd.f32 %v775, %v877
      %v879 = vpop.f32.mrb[0].mxu0
      %v880 = vadd.f32 %v775, %v879
      %881 = vmatprep.mubr.bf16.mxu0 0
      %882 = vmatmul.mubr.bf16.gmra.mrb[0].mxu0 %v824
      %v883 = vpop.f32.mrb[0].mxu0
      %v884 = vadd.f32 %v780, %v883
      %v885 = vpop.f32.mrb[0].mxu0
      %v886 = vadd.f32 %v780, %v885
      %v887 = vpop.f32.mrb[0].mxu0
      %v888 = vadd.f32 %v785, %v887
      %v889 = vpop.f32.mrb[0].mxu0
      %v890 = vadd.f32 %v785, %v889
      %891 = vmatprep.mubr.bf16.mxu0 0
      %892 = vmatmul.mubr.bf16.gmra.mrb[0].mxu0 %v827
      %v893 = vpop.f32.mrb[0].mxu0
      %v894 = vadd.f32 %v790, %v893
      %v895 = vpop.f32.mrb[0].mxu0
      %v896 = vadd.f32 %v790, %v895
      %v897 = vpop.f32.mrb[0].mxu0
      %v898 = vadd.f32 %v795, %v897
      %v899 = vpop.f32.mrb[0].mxu0
      %v900 = vadd.f32 %v795, %v899
      %901 = vdwg.mxu0
      %v902 = vmax.f32 %v864, 0.0
      %v903 = vmax.f32 %v866, 0.0
      %v904 = vmax.f32 %v868, 0.0
      %v905 = vmax.f32 %v870, 0.0
      %v906 = vmax.f32 %v874, 0.0
      %v907 = vmax.f32 %v876, 0.0
      %v908 = vmax.f32 %v878, 0.0
      %v909 = vmax.f32 %v880, 0.0
      %v910 = vmax.f32 %v884, 0.0
      %v911 = vmax.f32 %v886, 0.0
      %v912 = vmax.f32 %v888, 0.0
      %v913 = vmax.f32 %v890, 0.0
      %v914 = vmax.f32 %v894, 0.0
      %v915 = vmax.f32 %v896, 0.0
      %v916 = vmax.f32 %v898, 0.0
      %v917 = vmax.f32 %v900, 0.0
      %v918 = vld [vmem:[#allocation3] sm:$0xff]
      %v919 = vld [vmem:[#allocation3 + $0x8] sm:$0xff]
      %v920 = vld [vmem:[#allocation3 + $0x10] sm:$0xff]
      %v921 = vld [vmem:[#allocation3 + $0x18] sm:$0xff]
      %v922 = vld [vmem:[#allocation3 + $0x20] sm:$0xff]
      %v923 = vld [vmem:[#allocation3 + $0x28] sm:$0xff]
      %v924 = vld [vmem:[#allocation3 + $0x30] sm:$0xff]
      %v925 = vld [vmem:[#allocation3 + $0x38] sm:$0xff]
      %v926 = vmax.f32 %v918, %v902
      %v927 = vmax.f32 %v919, %v904
      %v928 = vmax.f32 %v920, %v906
      %v929 = vmax.f32 %v921, %v908
      %v930 = vmax.f32 %v922, %v910
      %v931 = vmax.f32 %v923, %v912
      %v932 = vmax.f32 %v924, %v914
      %v933 = vmax.f32 %v925, %v916
      %v934 = vmax.f32 %v926, %v903
      %v935 = vmax.f32 %v927, %v905
      %v936 = vmax.f32 %v928, %v907
      %v937 = vmax.f32 %v929, %v909
      %v938 = vmax.f32 %v930, %v911
      %v939 = vmax.f32 %v931, %v913
      %v940 = vmax.f32 %v932, %v915
      %v941 = vmax.f32 %v933, %v917
      %942 = vst [vmem:[#allocation3] sm:$0xff] %v934
      %943 = vst [vmem:[#allocation3 + $0x8] sm:$0xff] %v935
      %944 = vst [vmem:[#allocation3 + $0x10] sm:$0xff] %v936
      %945 = vst [vmem:[#allocation3 + $0x18] sm:$0xff] %v937
      %946 = vst [vmem:[#allocation3 + $0x20] sm:$0xff] %v938
      %947 = vst [vmem:[#allocation3 + $0x28] sm:$0xff] %v939
      %948 = vst [vmem:[#allocation3 + $0x30] sm:$0xff] %v940
      %949 = vst [vmem:[#allocation3 + $0x38] sm:$0xff] %v941
      // Predicated region
      $region61: #{surface_abstraction_cd.1} parent=55 // pred_check
        %p950 = pneg %p472
      $region62: #{surface_abstraction_cd.1} parent=55 // pred_check_branch
        %952 = sbr.rel (%p950) target = $region64
      $region63: #{surface_abstraction_cd.1} parent=55 // pred_region
        %v953 = vld [vmem:[#allocation3] sm:$0xff]
        %v954 = vld [vmem:[#allocation3 + $0x8] sm:$0xff]
        %v955 = vld [vmem:[#allocation3 + $0x10] sm:$0xff]
        %v956 = vld [vmem:[#allocation3 + $0x18] sm:$0xff]
        %v957 = vld [vmem:[#allocation3 + $0x20] sm:$0xff]
        %v958 = vld [vmem:[#allocation3 + $0x28] sm:$0xff]
        %v959 = vld [vmem:[#allocation3 + $0x30] sm:$0xff]
        %v960 = vld [vmem:[#allocation3 + $0x38] sm:$0xff]
        %961 = vmax.xlane.f32.xlu0 %v953
        %v962 = vpop.xlane.xlu0 %961
        %963 = vmax.xlane.f32.xlu0 %v954
        %v964 = vpop.xlane.xlu0 %963
        %965 = vmax.xlane.f32.xlu0 %v955
        %v966 = vpop.xlane.xlu0 %965
        %967 = vmax.xlane.f32.xlu0 %v956
        %v968 = vpop.xlane.xlu0 %967
        %969 = vmax.xlane.f32.xlu0 %v957
        %v970 = vpop.xlane.xlu0 %969
        %971 = vmax.xlane.f32.xlu0 %v958
        %v972 = vpop.xlane.xlu0 %971
        %973 = vmax.xlane.f32.xlu0 %v959
        %v974 = vpop.xlane.xlu0 %973
        %975 = vmax.xlane.f32.xlu0 %v960
        %v976 = vpop.xlane.xlu0 %975
        %vm977 = vcmask 7168
        %978 = vst.msk [vmem:[%s470] sm:$0xff] %vm977, %v962
        %979 = vst.msk [vmem:[%s470 + $0x8] sm:$0xff] %vm977, %v964
        %980 = vst.msk [vmem:[%s470 + $0x10] sm:$0xff] %vm977, %v966
        %981 = vst.msk [vmem:[%s470 + $0x18] sm:$0xff] %vm977, %v968
        %982 = vst.msk [vmem:[%s470 + $0x20] sm:$0xff] %vm977, %v970
        %983 = vst.msk [vmem:[%s470 + $0x28] sm:$0xff] %vm977, %v972
        %984 = vst.msk [vmem:[%s470 + $0x30] sm:$0xff] %vm977, %v974
        %985 = vst.msk [vmem:[%s470 + $0x38] sm:$0xff] %vm977, %v976
      $region64: #{surface_abstraction_cd.1} parent=55 // pred_fallthru
        _
      %p986 = scmp.lt.s32.totalorder %s25, 0
      %s987 = scalar_select %p986, %s25, 0
      %p988 = scmp.lt.s32.totalorder %s26, 1
      %s989 = scalar_select %p988, %s26, 1
      %s990 = smul.addr %s989, 8
      %s991 = smul.addr %s987, 16
      %s992 = sadd.s32 %s990, %s991
      %s993 = smul.addr %s992, 8
      %s994 = scalar_lea.vmem %s9, %s993
      // Predicated region
      $region65: #{surface_abstraction_cd.1} parent=55 // pred_check
        %p995 = pneg %p275
      $region66: #{surface_abstraction_cd.1} parent=55 // pred_check_branch
        %997 = sbr.rel (%p995) target = $region68
      $region67: #{surface_abstraction_cd.1} parent=55 // pred_region
        _
      $region68: #{surface_abstraction_cd.1} parent=55 // pred_fallthru
        _
    $region56: #{surface_abstraction_cd.1} parent=5 // pred_fallthru
      _
    %p998 = scmp.le.s32.totalorder 2, %s15
    // Predicated region
    $region69: #{surface_abstraction_cd.1} parent=5 // pred_check
      %p999 = pneg %p998
    $region70: #{surface_abstraction_cd.1} parent=5 // pred_check_branch
      %1001 = sbr.rel (%p999) target = $region72
    $region71: #{surface_abstraction_cd.1} parent=5 // pred_region
      %s1002 = ssub.s32 %s15, 2
      // Predicated region
      $region73: #{surface_abstraction_cd.1} parent=71 // pred_check
        %p1003 = pneg %p281
      $region74: #{surface_abstraction_cd.1} parent=71 // pred_check_branch
        %1005 = sbr.rel (%p1003) target = $region76
      $region75: #{surface_abstraction_cd.1} parent=71 // pred_region
        %p1006 = scmp.lt.s32.totalorder %s28, 0
        %s1007 = scalar_select %p1006, %s28, 0
        %p1008 = scmp.lt.s32.totalorder %s29, 1
        %s1009 = scalar_select %p1008, %s29, 1
        %s1010 = smul.addr %s1009, 8
        %s1011 = smul.addr %s1007, 16
        %s1012 = sadd.s32 %s1010, %s1011
        %s1013 = smul.addr %s1012, 8
        %s1014 = scalar_lea.vmem %s9, %s1013
      $region76: #{surface_abstraction_cd.1} parent=71 // pred_fallthru
        _
    $region72: #{surface_abstraction_cd.1} parent=5 // pred_fallthru
      _
  $region6: #{surface_abstraction_cd.1} parent=0 // loop_footer
    %s19 = sadd.s32 1, %s15
  $region7: #{surface_abstraction_cd.1} parent=0 // loop_footer_branch
    %14 = sbr.rel target = $region3
  $region8: #{surface_abstraction_cd.1} parent=0 // loop_exit
    _

</llo_original>
